<compile_context>
chip_gen: v6e
topology: v6e:2x2x1
jax: 0.10.0
libtpu: 0.0.40
codegen_flags: <defaults>
</compile_context>

<pallas_src>
import numpy as np
import jax
import jax.numpy as jnp
from jax.experimental import pallas as pl
from jax.experimental.pallas import tpu as pltpu

H = 8            # heads_num
M = 8            # num_agent_tokens
C = 32           # hidden_size (= dim_inner)
D = C // H       # dim_head = 4
HD = H * D       # 32
HM = H * M       # 64
SCALE = D ** -0.5

BF16 = jnp.bfloat16
F32 = jnp.float32


def agent_attention_kernel(x_ref, wpack_ref, bg_ref, simw_ref, mixw_ref,
                           onesq_ref, onesb_ref, mask_ref, wo_ref,
                           out_ref, agt_ref):
    """Single invocation over all B*N rows; head and batch dims folded into lanes/sublanes."""
    B = agt_ref.shape[0]
    N = x_ref.shape[0] // B

    x = x_ref[...]                                                     # (B*N, C) bf16

    # ---- ONE fused projection: [q | k | v | gate_pre], 128-lane MXU push ----
    proj = jnp.dot(x, wpack_ref[...], preferred_element_type=F32)      # (B*N, 4*HD)
    qk = proj[:, :2 * HD]                                              # (B*N, 64)
    v = proj[:, 2 * HD:3 * HD]                                         # (B*N, HD)
    gates = jax.nn.sigmoid(proj[:, 3 * HD:] + bg_ref[...])             # (B*N, HD), f32

    # ---- fused similarities: [qa_sim | ak_sim^T] = [q|k] @ blockdiag(a, a) ----
    sims = jnp.dot(qk.astype(BF16), simw_ref[...],
                   preferred_element_type=F32)                         # (B*N, 2*HM)
    qa_sim = sims[:, :HM]                                              # (B*N, HM)
    ak_simT = sims[:, HM:]                                             # (B*N, HM) = ak_sim^T

    # qa softmax over agent tokens (lane blocks of M per head).  Row-global max is a
    # mathematically equivalent stabilizer; block sums via a 0/1 block matmul.
    e_qa = jnp.exp(qa_sim - jnp.max(qa_sim, axis=-1, keepdims=True))
    qa_den = jnp.dot(e_qa.astype(BF16), onesq_ref[...],
                     preferred_element_type=F32)                       # per-head block sums
    qa_attn = e_qa * pl.reciprocal(qa_den, approx=True)

    # ak softmax over sequence positions, per batch.  Column-global max is a valid
    # stabilizer; per-batch sums via the batch block-ones matmul (broadcast to rows).
    e_ak = jnp.exp(ak_simT - jnp.max(ak_simT, axis=0, keepdims=True))
    ak_den = jnp.dot(onesb_ref[...], e_ak.astype(BF16),
                     preferred_element_type=F32)                       # (B*N, HM)
    ak_attnT = e_ak * pl.reciprocal(ak_den, approx=True)

    # ---- fused talking heads: one 128-lane matmul against blockdiag(kqa, kak) ----
    attn_pack = jnp.concatenate([qa_attn, ak_attnT], axis=1).astype(BF16)   # (B*N, 2*HM)
    mixed = jnp.dot(attn_pack, mixw_ref[...], preferred_element_type=F32)   # (B*N, 2*HM)
    qa_mix = mixed[:, :HM].astype(BF16)
    ak_mixT = mixed[:, HM:].astype(BF16)
    v16 = v.astype(BF16)

    # ---- batch-coupled ops: agent gather + second application (B statically unrolled) ----
    outh = []
    for b in range(B):
        sl = slice(b * N, (b + 1) * N)
        # full[g*M+m, h*D+d] = sum_n ak_mixT[n, g*M+m] * v[n, h*D+d]; keep g == h blocks.
        full_b = jax.lax.dot_general(ak_mixT[sl], v16[sl],
                                     (((0,), (0,)), ((), ())),
                                     preferred_element_type=F32)       # (HM, HD)
        agt_b = full_b * mask_ref[...]
        agt_ref[b] = agt_b                                             # single dense store
        outh.append(jnp.dot(qa_mix[sl], agt_b.astype(BF16),
                            preferred_element_type=F32))               # (N, HD)

    out_h = jnp.concatenate(outh, axis=0)                              # (B*N, HD)

    # ---- gate + fused output projection ----
    out_ref[...] = jnp.dot((out_h * gates).astype(BF16), wo_ref[...],
                           preferred_element_type=F32)                 # (B*N, C)


def fold_params(params):
    """One-time weight folding (hoisted out of the per-forward path)."""
    wq, wk, wv, a_tok, wqa, wak, wg, bg, wo = params

    # Q/K/V/gate projections packed into a single (C, 4*H*D) = (32, 128) bf16 matrix.
    wq_f = jnp.transpose(wq, (1, 0, 2)).reshape(C, HD)
    wk_f = jnp.transpose(wk, (1, 0, 2)).reshape(C, HD)
    wv_f = jnp.transpose(wv, (1, 0, 2)).reshape(C, HD)
    wg_f = jnp.repeat(wg[:, :, 0].T, D, axis=1)                        # (C, HD), head col x D
    wpack = jnp.concatenate([wq_f, wk_f, wv_f, wg_f], axis=1).astype(BF16)
    bg_f = jnp.repeat(bg, D)[None, :].astype(F32)                      # (1, HD)

    # Agent tokens as block-diagonal (HD, HM) with SCALE folded; doubled for [q|k].
    a_blk = jnp.einsum('hmd,hg->hdgm', a_tok.astype(F32) * SCALE,
                       jnp.eye(H, dtype=F32)).reshape(HD, HM)
    simw = jnp.zeros((2 * HD, 2 * HM), F32)
    simw = simw.at[:HD, :HM].set(a_blk).at[HD:, HM:].set(a_blk).astype(BF16)   # (64, 128)

    # Talking heads (1x1 conv over heads) as kron(W.T, I_M), packed block-diagonally.
    eye_m = jnp.eye(M, dtype=F32)
    kqa = jnp.kron(wqa.T.astype(F32), eye_m)
    kak = jnp.kron(wak.T.astype(F32), eye_m)
    mixw = jnp.zeros((2 * HM, 2 * HM), F32)
    mixw = mixw.at[:HM, :HM].set(kqa).at[HM:, HM:].set(kak).astype(BF16)       # (128, 128)

    # Structural 0/1 matrices (exact in bf16 / f32).
    onesq = jnp.asarray(np.kron(np.eye(H), np.ones((M, M))), dtype=BF16)       # (HM, HM)
    blk_mask = jnp.asarray(np.kron(np.eye(H), np.ones((M, D))), dtype=F32)     # (HM, HD)
    wo_f = wo.reshape(HD, C).astype(BF16)                                      # (HD, C)
    return wpack, bg_f, simw, mixw, onesq, blk_mask, wo_f


@jax.jit
def agent_attention(x, folded):
    wpack, bg_f, simw, mixw, onesq, blk_mask, wo_f = folded
    B, N, _ = x.shape
    x_flat = x.reshape(B * N, C).astype(BF16)
    # batch block-ones (exact compile-time constant): per-batch row-sum broadcaster.
    onesb = jnp.asarray(np.kron(np.eye(B), np.ones((N, N))), dtype=BF16)       # (B*N, B*N)

    def const(arr):
        shp = arr.shape
        return pl.BlockSpec(shp, lambda i: (0,) * len(shp))

    out_flat, agt_blk = pl.pallas_call(
        agent_attention_kernel,
        out_shape=(jax.ShapeDtypeStruct((B * N, C), F32),
                   jax.ShapeDtypeStruct((B, HM, HD), F32)),
        grid=(1,),
        in_specs=[const(x_flat), const(wpack), const(bg_f), const(simw), const(mixw),
                  const(onesq), const(onesb), const(blk_mask), const(wo_f)],
        out_specs=(pl.BlockSpec((B * N, C), lambda i: (0, 0)),
                   pl.BlockSpec((B, HM, HD), lambda i: (0, 0, 0))),
        compiler_params=pltpu.CompilerParams(dimension_semantics=("arbitrary",)),
    )(x_flat, wpack, bg_f, simw, mixw, onesq, onesb, blk_mask, wo_f)

    out = out_flat.reshape(B, N, C)
    # Off-diagonal head blocks are exactly zero: summing over the COLUMN-block head axis
    # (axis=3) extracts the diagonal blocks directly in (B, H, M, D) order.
    agt = agt_blk.reshape(B, H, M, H, D).sum(axis=3)
    return out, agt


def reference(x, params):
    """Pure-JAX reference reproducing the PyTorch forward (mask=None, eval mode)."""
    wq, wk, wv, a_tok, wqa, wak, wg, bg, wo = params
    B = x.shape[0]
    with jax.default_matmul_precision("highest"):
        q = jnp.einsum('bnc,hcd->bhnd', x, wq)
        k = jnp.einsum('bnc,hcd->bhnd', x, wk)
        v = jnp.einsum('bnc,hcd->bhnd', x, wv)
        a = jnp.broadcast_to(a_tok[None] * SCALE, (B, H, M, D))
        qa_sim = jnp.einsum('bhnd,bhmd->bhnm', q, a)
        ak_sim = jnp.einsum('bhmd,bhnd->bhmn', a, k)
        qa_attn = jax.nn.softmax(qa_sim, axis=-1)
        ak_attn = jax.nn.softmax(ak_sim, axis=-1)
        qa_attn = jnp.einsum('gh,bhnm->bgnm', wqa, qa_attn)   # talking heads (1x1 conv)
        ak_attn = jnp.einsum('gh,bhmn->bgmn', wak, ak_attn)
        agt = jnp.einsum('bhmn,bhnd->bhmd', ak_attn, v)
        out_h = jnp.einsum('bhnm,bhmd->bhnd', qa_attn, agt)
        gates = jax.nn.sigmoid(jnp.einsum('bnc,hcx->bhnx', x, wg)
                               + bg[None, :, None, None])
        out_h = out_h * gates
        out = jnp.einsum('bhnd,hdc->bnc', out_h, wo)
    return out, agt


if __name__ == "__main__":
    B, N = 2, 16
    key = jax.random.PRNGKey(0)
    ks = jax.random.split(key, 10)
    x = jax.random.normal(ks[0], (B, N, C), jnp.float32)
    wq = jax.random.normal(ks[1], (H, C, D), jnp.float32) * 0.05
    wk = jax.random.normal(ks[2], (H, C, D), jnp.float32) * 0.05
    wv = jax.random.normal(ks[3], (H, C, D), jnp.float32) * 0.05
    a_tok = jax.random.normal(ks[4], (H, M, D), jnp.float32) * 0.02   # nn.init.normal_(std=0.02)
    wqa = jax.random.normal(ks[5], (H, H), jnp.float32) * (1.0 / H) ** 0.5
    wak = jax.random.normal(ks[6], (H, H), jnp.float32) * (1.0 / H) ** 0.5
    wg = jax.random.normal(ks[7], (H, C, 1), jnp.float32) * 0.05
    bg = jax.random.normal(ks[8], (H,), jnp.float32) * 0.05
    wo = jax.random.normal(ks[9], (H, D, C), jnp.float32) * 0.05
    params = (wq, wk, wv, a_tok, wqa, wak, wg, bg, wo)

    folded = fold_params(params)                     # one-time weight prep
    out_k, agt_k = jax.block_until_ready(agent_attention(x, folded))
    out_r, agt_r = reference(x, params)

    # Tolerances account for bf16 MXU operands throughout (f32 accumulation) and the
    # approx reciprocal; an algorithmic error (e.g. head/token transpose) is ~100x larger.
    np.testing.assert_allclose(np.asarray(out_k), np.asarray(out_r), rtol=3e-2, atol=5e-3)
    np.testing.assert_allclose(np.asarray(agt_k), np.asarray(agt_r), rtol=3e-2, atol=5e-3)
    print("KERNEL_OK")
</pallas_src>

<mosaic_0001>
module attributes {stable_mosaic.version = 11 : i64} {
  func.func @agent_attention_kernel(%arg0: i32, %arg1: memref<32x32xbf16, #tpu.memory_space<vmem>>, %arg2: memref<32x128xbf16, #tpu.memory_space<vmem>>, %arg3: memref<1x32xf32, #tpu.memory_space<vmem>>, %arg4: memref<64x128xbf16, #tpu.memory_space<vmem>>, %arg5: memref<128x128xbf16, #tpu.memory_space<vmem>>, %arg6: memref<64x64xbf16, #tpu.memory_space<vmem>>, %arg7: memref<32x32xbf16, #tpu.memory_space<vmem>>, %arg8: memref<64x32xf32, #tpu.memory_space<vmem>>, %arg9: memref<32x32xbf16, #tpu.memory_space<vmem>>, %arg10: memref<32x32xf32, #tpu.memory_space<vmem>>, %arg11: memref<2x64x32xf32, #tpu.memory_space<vmem>>) attributes {dimension_semantics = [#tpu.dimension_semantics<arbitrary>], iteration_bounds = array<i64: 1>, scalar_prefetch = 0 : i64, scratch_operands = 0 : i64, tpu.core_type = #tpu.core_type<tc>, window_params = [{pipeline_mode = #tpu.pipeline_mode<synchronous>, transform_indices = @transform_0, window_bounds = array<i64: 32, 32>}, {pipeline_mode = #tpu.pipeline_mode<synchronous>, transform_indices = @transform_1, window_bounds = array<i64: 32, 128>}, {pipeline_mode = #tpu.pipeline_mode<synchronous>, transform_indices = @transform_2, window_bounds = array<i64: 1, 32>}, {pipeline_mode = #tpu.pipeline_mode<synchronous>, transform_indices = @transform_3, window_bounds = array<i64: 64, 128>}, {pipeline_mode = #tpu.pipeline_mode<synchronous>, transform_indices = @transform_4, window_bounds = array<i64: 128, 128>}, {pipeline_mode = #tpu.pipeline_mode<synchronous>, transform_indices = @transform_5, window_bounds = array<i64: 64, 64>}, {pipeline_mode = #tpu.pipeline_mode<synchronous>, transform_indices = @transform_6, window_bounds = array<i64: 32, 32>}, {pipeline_mode = #tpu.pipeline_mode<synchronous>, transform_indices = @transform_7, window_bounds = array<i64: 64, 32>}, {pipeline_mode = #tpu.pipeline_mode<synchronous>, transform_indices = @transform_8, window_bounds = array<i64: 32, 32>}, {pipeline_mode = #tpu.pipeline_mode<synchronous>, transform_indices = @transform_9, window_bounds = array<i64: 32, 32>}, {pipeline_mode = #tpu.pipeline_mode<synchronous>, transform_indices = @transform_10, window_bounds = array<i64: 2, 64, 32>}]} {
    %c0 = arith.constant 0 : index
    %c0_0 = arith.constant 0 : index
    %0 = vector.load %arg1[%c0, %c0_0] : memref<32x32xbf16, #tpu.memory_space<vmem>>, vector<32x32xbf16>
    %c0_1 = arith.constant 0 : index
    %c0_2 = arith.constant 0 : index
    %1 = vector.load %arg2[%c0_1, %c0_2] : memref<32x128xbf16, #tpu.memory_space<vmem>>, vector<32x128xbf16>
    %cst = arith.constant dense<0.000000e+00> : vector<32x128xf32>
    %2 = tpu.matmul %0, %1, %cst {dimension_numbers = #tpu.dot_dimension_numbers<[1], [0], [0], [1], [0, 0, 1, 1], [], []>} : vector<32x32xbf16>, vector<32x128xbf16>, vector<32x128xf32> -> vector<32x128xf32>
    %3 = vector.extract_strided_slice %2 {offsets = [0, 0], sizes = [32, 64], strides = [1, 1]} : vector<32x128xf32> to vector<32x64xf32>
    %4 = vector.extract_strided_slice %2 {offsets = [0, 64], sizes = [32, 32], strides = [1, 1]} : vector<32x128xf32> to vector<32x32xf32>
    %5 = vector.extract_strided_slice %2 {offsets = [0, 96], sizes = [32, 32], strides = [1, 1]} : vector<32x128xf32> to vector<32x32xf32>
    %c0_3 = arith.constant 0 : index
    %c0_4 = arith.constant 0 : index
    %6 = vector.load %arg3[%c0_3, %c0_4] : memref<1x32xf32, #tpu.memory_space<vmem>>, vector<1x32xf32>
    %7 = vector.broadcast %6 : vector<1x32xf32> to vector<32x32xf32>
    %8 = arith.addf %5, %7 : vector<32x32xf32>
    %9 = arith.negf %8 : vector<32x32xf32>
    %10 = math.exp %9 : vector<32x32xf32>
    %cst_5 = arith.constant 1.000000e+00 : f32
    %11 = vector.broadcast %cst_5 : f32 to vector<32x32xf32>
    %12 = arith.addf %11, %10 : vector<32x32xf32>
    %13 = arith.divf %11, %12 : vector<32x32xf32>
    %14 = arith.truncf %3 : vector<32x64xf32> to vector<32x64xbf16>
    %c0_6 = arith.constant 0 : index
    %c0_7 = arith.constant 0 : index
    %15 = vector.load %arg4[%c0_6, %c0_7] : memref<64x128xbf16, #tpu.memory_space<vmem>>, vector<64x128xbf16>
    %cst_8 = arith.constant dense<0.000000e+00> : vector<32x128xf32>
    %16 = tpu.matmul %14, %15, %cst_8 {dimension_numbers = #tpu.dot_dimension_numbers<[1], [0], [0], [1], [0, 0, 1, 1], [], []>} : vector<32x64xbf16>, vector<64x128xbf16>, vector<32x128xf32> -> vector<32x128xf32>
    %17 = vector.extract_strided_slice %16 {offsets = [0, 0], sizes = [32, 64], strides = [1, 1]} : vector<32x128xf32> to vector<32x64xf32>
    %18 = vector.extract_strided_slice %16 {offsets = [0, 64], sizes = [32, 64], strides = [1, 1]} : vector<32x128xf32> to vector<32x64xf32>
    %cst_9 = arith.constant dense<0xFF800000> : vector<32xf32>
    %19 = vector.multi_reduction <maximumf>, %17, %cst_9 [1] : vector<32x64xf32> to vector<32xf32>
    %20 = vector.shape_cast %19 : vector<32xf32> to vector<32x1xf32>
    %21 = vector.broadcast %20 : vector<32x1xf32> to vector<32x64xf32>
    %22 = arith.subf %17, %21 : vector<32x64xf32>
    %23 = math.exp %22 : vector<32x64xf32>
    %24 = arith.truncf %23 : vector<32x64xf32> to vector<32x64xbf16>
    %c0_10 = arith.constant 0 : index
    %c0_11 = arith.constant 0 : index
    %25 = vector.load %arg6[%c0_10, %c0_11] : memref<64x64xbf16, #tpu.memory_space<vmem>>, vector<64x64xbf16>
    %cst_12 = arith.constant dense<0.000000e+00> : vector<32x64xf32>
    %26 = tpu.matmul %24, %25, %cst_12 {dimension_numbers = #tpu.dot_dimension_numbers<[1], [0], [0], [1], [0, 0, 1, 1], [], []>} : vector<32x64xbf16>, vector<64x64xbf16>, vector<32x64xf32> -> vector<32x64xf32>
    %27 = tpu.reciprocal %26 {approx = true} : vector<32x64xf32> -> vector<32x64xf32>
    %28 = arith.mulf %23, %27 : vector<32x64xf32>
    %cst_13 = arith.constant dense<0xFF800000> : vector<64xf32>
    %29 = vector.multi_reduction <maximumf>, %18, %cst_13 [0] : vector<32x64xf32> to vector<64xf32>
    %30 = vector.shape_cast %29 : vector<64xf32> to vector<1x64xf32>
    %31 = vector.broadcast %30 : vector<1x64xf32> to vector<32x64xf32>
    %32 = arith.subf %18, %31 : vector<32x64xf32>
    %33 = math.exp %32 : vector<32x64xf32>
    %c0_14 = arith.constant 0 : index
    %c0_15 = arith.constant 0 : index
    %34 = vector.load %arg7[%c0_14, %c0_15] : memref<32x32xbf16, #tpu.memory_space<vmem>>, vector<32x32xbf16>
    %35 = arith.truncf %33 : vector<32x64xf32> to vector<32x64xbf16>
    %cst_16 = arith.constant dense<0.000000e+00> : vector<32x64xf32>
    %36 = tpu.matmul %34, %35, %cst_16 {dimension_numbers = #tpu.dot_dimension_numbers<[1], [0], [0], [1], [0, 0, 1, 1], [], []>} : vector<32x32xbf16>, vector<32x64xbf16>, vector<32x64xf32> -> vector<32x64xf32>
    %37 = tpu.reciprocal %36 {approx = true} : vector<32x64xf32> -> vector<32x64xf32>
    %38 = arith.mulf %33, %37 : vector<32x64xf32>
    %39 = tpu.concatenate %28, %38 in 1 : vector<32x64xf32>, vector<32x64xf32> -> vector<32x128xf32>
    %40 = arith.truncf %39 : vector<32x128xf32> to vector<32x128xbf16>
    %c0_17 = arith.constant 0 : index
    %c0_18 = arith.constant 0 : index
    %41 = vector.load %arg5[%c0_17, %c0_18] : memref<128x128xbf16, #tpu.memory_space<vmem>>, vector<128x128xbf16>
    %cst_19 = arith.constant dense<0.000000e+00> : vector<32x128xf32>
    %42 = tpu.matmul %40, %41, %cst_19 {dimension_numbers = #tpu.dot_dimension_numbers<[1], [0], [0], [1], [0, 0, 1, 1], [], []>} : vector<32x128xbf16>, vector<128x128xbf16>, vector<32x128xf32> -> vector<32x128xf32>
    %43 = vector.extract_strided_slice %42 {offsets = [0, 0], sizes = [32, 64], strides = [1, 1]} : vector<32x128xf32> to vector<32x64xf32>
    %44 = arith.truncf %43 : vector<32x64xf32> to vector<32x64xbf16>
    %45 = vector.extract_strided_slice %42 {offsets = [0, 64], sizes = [32, 64], strides = [1, 1]} : vector<32x128xf32> to vector<32x64xf32>
    %46 = arith.truncf %45 : vector<32x64xf32> to vector<32x64xbf16>
    %47 = arith.truncf %4 : vector<32x32xf32> to vector<32x32xbf16>
    %48 = vector.extract_strided_slice %46 {offsets = [0, 0], sizes = [16, 64], strides = [1, 1]} : vector<32x64xbf16> to vector<16x64xbf16>
    %49 = vector.extract_strided_slice %47 {offsets = [0, 0], sizes = [16, 32], strides = [1, 1]} : vector<32x32xbf16> to vector<16x32xbf16>
    %cst_20 = arith.constant dense<0.000000e+00> : vector<64x32xf32>
    %50 = tpu.matmul %48, %49, %cst_20 {dimension_numbers = #tpu.dot_dimension_numbers<[0], [0], [1], [1], [0, 1, 1, 1], [], []>} : vector<16x64xbf16>, vector<16x32xbf16>, vector<64x32xf32> -> vector<64x32xf32>
    %c0_21 = arith.constant 0 : index
    %c0_22 = arith.constant 0 : index
    %51 = vector.load %arg8[%c0_21, %c0_22] : memref<64x32xf32, #tpu.memory_space<vmem>>, vector<64x32xf32>
    %52 = arith.mulf %50, %51 : vector<64x32xf32>
    %c0_23 = arith.constant 0 : index
    %c0_24 = arith.constant 0 : index
    %c0_25 = arith.constant 0 : index
    %53 = vector.load %arg11[%c0_23, %c0_24, %c0_25] : memref<2x64x32xf32, #tpu.memory_space<vmem>>, vector<1x64x32xf32>
    %54 = vector.shape_cast %53 : vector<1x64x32xf32> to vector<64x32xf32>
    %55 = vector.shape_cast %52 : vector<64x32xf32> to vector<1x64x32xf32>
    tpu.vector_store %arg11[%c0_23, %c0_24, %c0_25], %55 {strides = array<i32>} : memref<2x64x32xf32, #tpu.memory_space<vmem>>, vector<1x64x32xf32>,
    %56 = vector.extract_strided_slice %44 {offsets = [0, 0], sizes = [16, 64], strides = [1, 1]} : vector<32x64xbf16> to vector<16x64xbf16>
    %57 = arith.truncf %52 : vector<64x32xf32> to vector<64x32xbf16>
    %cst_26 = arith.constant dense<0.000000e+00> : vector<16x32xf32>
    %58 = tpu.matmul %56, %57, %cst_26 {dimension_numbers = #tpu.dot_dimension_numbers<[1], [0], [0], [1], [0, 0, 1, 1], [], []>} : vector<16x64xbf16>, vector<64x32xbf16>, vector<16x32xf32> -> vector<16x32xf32>
    %59 = vector.extract_strided_slice %46 {offsets = [16, 0], sizes = [16, 64], strides = [1, 1]} : vector<32x64xbf16> to vector<16x64xbf16>
    %60 = vector.extract_strided_slice %47 {offsets = [16, 0], sizes = [16, 32], strides = [1, 1]} : vector<32x32xbf16> to vector<16x32xbf16>
    %cst_27 = arith.constant dense<0.000000e+00> : vector<64x32xf32>
    %61 = tpu.matmul %59, %60, %cst_27 {dimension_numbers = #tpu.dot_dimension_numbers<[0], [0], [1], [1], [0, 1, 1, 1], [], []>} : vector<16x64xbf16>, vector<16x32xbf16>, vector<64x32xf32> -> vector<64x32xf32>
    %c0_28 = arith.constant 0 : index
    %c0_29 = arith.constant 0 : index
    %62 = vector.load %arg8[%c0_28, %c0_29] : memref<64x32xf32, #tpu.memory_space<vmem>>, vector<64x32xf32>
    %63 = arith.mulf %61, %62 : vector<64x32xf32>
    %c1 = arith.constant 1 : index
    %c0_30 = arith.constant 0 : index
    %c0_31 = arith.constant 0 : index
    %64 = vector.load %arg11[%c1, %c0_30, %c0_31] : memref<2x64x32xf32, #tpu.memory_space<vmem>>, vector<1x64x32xf32>
    %65 = vector.shape_cast %64 : vector<1x64x32xf32> to vector<64x32xf32>
    %66 = vector.shape_cast %63 : vector<64x32xf32> to vector<1x64x32xf32>
    tpu.vector_store %arg11[%c1, %c0_30, %c0_31], %66 {strides = array<i32>} : memref<2x64x32xf32, #tpu.memory_space<vmem>>, vector<1x64x32xf32>,
    %67 = vector.extract_strided_slice %44 {offsets = [16, 0], sizes = [16, 64], strides = [1, 1]} : vector<32x64xbf16> to vector<16x64xbf16>
    %68 = arith.truncf %63 : vector<64x32xf32> to vector<64x32xbf16>
    %cst_32 = arith.constant dense<0.000000e+00> : vector<16x32xf32>
    %69 = tpu.matmul %67, %68, %cst_32 {dimension_numbers = #tpu.dot_dimension_numbers<[1], [0], [0], [1], [0, 0, 1, 1], [], []>} : vector<16x64xbf16>, vector<64x32xbf16>, vector<16x32xf32> -> vector<16x32xf32>
    %70 = tpu.concatenate %58, %69 in 0 : vector<16x32xf32>, vector<16x32xf32> -> vector<32x32xf32>
    %71 = arith.mulf %70, %13 : vector<32x32xf32>
    %72 = arith.truncf %71 : vector<32x32xf32> to vector<32x32xbf16>
    %c0_33 = arith.constant 0 : index
    %c0_34 = arith.constant 0 : index
    %73 = vector.load %arg9[%c0_33, %c0_34] : memref<32x32xbf16, #tpu.memory_space<vmem>>, vector<32x32xbf16>
    %cst_35 = arith.constant dense<0.000000e+00> : vector<32x32xf32>
    %74 = tpu.matmul %72, %73, %cst_35 {dimension_numbers = #tpu.dot_dimension_numbers<[1], [0], [0], [1], [0, 0, 1, 1], [], []>} : vector<32x32xbf16>, vector<32x32xbf16>, vector<32x32xf32> -> vector<32x32xf32>
    %c0_36 = arith.constant 0 : index
    %c0_37 = arith.constant 0 : index
    %75 = vector.load %arg10[%c0_36, %c0_37] : memref<32x32xf32, #tpu.memory_space<vmem>>, vector<32x32xf32>
    tpu.vector_store %arg10[%c0_36, %c0_37], %74 {strides = array<i32>} : memref<32x32xf32, #tpu.memory_space<vmem>>, vector<32x32xf32>,
    return
  }
  func.func @transform_0(%arg0: i32) -> (i32, i32) {
    %c0_i32 = arith.constant 0 : i32
    %c0_i32_0 = arith.constant 0 : i32
    %c0_i32_1 = arith.constant 0 : i32
    return %c0_i32, %c0_i32_0 : i32, i32
  }
  func.func @transform_1(%arg0: i32) -> (i32, i32) {
    %c0_i32 = arith.constant 0 : i32
    %c0_i32_0 = arith.constant 0 : i32
    %c0_i32_1 = arith.constant 0 : i32
    return %c0_i32, %c0_i32_0 : i32, i32
  }
  func.func @transform_2(%arg0: i32) -> (i32, i32) {
    %c0_i32 = arith.constant 0 : i32
    %c0_i32_0 = arith.constant 0 : i32
    %c0_i32_1 = arith.constant 0 : i32
    return %c0_i32, %c0_i32_0 : i32, i32
  }
  func.func @transform_3(%arg0: i32) -> (i32, i32) {
    %c0_i32 = arith.constant 0 : i32
    %c0_i32_0 = arith.constant 0 : i32
    %c0_i32_1 = arith.constant 0 : i32
    return %c0_i32, %c0_i32_0 : i32, i32
  }
  func.func @transform_4(%arg0: i32) -> (i32, i32) {
    %c0_i32 = arith.constant 0 : i32
    %c0_i32_0 = arith.constant 0 : i32
    %c0_i32_1 = arith.constant 0 : i32
    return %c0_i32, %c0_i32_0 : i32, i32
  }
  func.func @transform_5(%arg0: i32) -> (i32, i32) {
    %c0_i32 = arith.constant 0 : i32
    %c0_i32_0 = arith.constant 0 : i32
    %c0_i32_1 = arith.constant 0 : i32
    return %c0_i32, %c0_i32_0 : i32, i32
  }
  func.func @transform_6(%arg0: i32) -> (i32, i32) {
    %c0_i32 = arith.constant 0 : i32
    %c0_i32_0 = arith.constant 0 : i32
    %c0_i32_1 = arith.constant 0 : i32
    return %c0_i32, %c0_i32_0 : i32, i32
  }
  func.func @transform_7(%arg0: i32) -> (i32, i32) {
    %c0_i32 = arith.constant 0 : i32
    %c0_i32_0 = arith.constant 0 : i32
    %c0_i32_1 = arith.constant 0 : i32
    return %c0_i32, %c0_i32_0 : i32, i32
  }
  func.func @transform_8(%arg0: i32) -> (i32, i32) {
    %c0_i32 = arith.constant 0 : i32
    %c0_i32_0 = arith.constant 0 : i32
    %c0_i32_1 = arith.constant 0 : i32
    return %c0_i32, %c0_i32_0 : i32, i32
  }
  func.func @transform_9(%arg0: i32) -> (i32, i32) {
    %c0_i32 = arith.constant 0 : i32
    %c0_i32_0 = arith.constant 0 : i32
    %c0_i32_1 = arith.constant 0 : i32
    return %c0_i32, %c0_i32_0 : i32, i32
  }
  func.func @transform_10(%arg0: i32) -> (i32, i32, i32) {
    %c0_i32 = arith.constant 0 : i32
    %c0_i32_0 = arith.constant 0 : i32
    %c0_i32_1 = arith.constant 0 : i32
    %c0_i32_2 = arith.constant 0 : i32
    return %c0_i32, %c0_i32_0, %c0_i32_1 : i32, i32, i32
  }
}

</mosaic_0001>

<llo_original>
// kernel: agent_attention.1
$region0: #{agent_attention.1}
  #allocation0 [shape = 'u32[]', space=smem, size = 0x4, offset = 0x4, fixed_abs, tag = 'smem constant byte address 0x4 - core index']
  #allocation1 [shape = 'u32[144,128]{1,0:T(1,128)}', space=vmem, size = 0x12000, scoped, tag = 'internal scratch']
  %s0 = inlined_call_operand.vmem [shape: bf16[32,32], index: 0, kind: input, shape index: {}]
  %s1 = inlined_call_operand.vmem [shape: bf16[32,128], index: 1, kind: input, shape index: {}]
  %s2 = inlined_call_operand.hbm [shape: f32[1,32], index: 2, kind: input, shape index: {}]
  %s3 = inlined_call_operand.vmem [shape: bf16[64,128], index: 3, kind: input, shape index: {}]
  %s4 = inlined_call_operand.vmem [shape: bf16[128,128], index: 4, kind: input, shape index: {}]
  %s5 = inlined_call_operand.vmem [shape: bf16[64,64], index: 5, kind: input, shape index: {}]
  %s6 = inlined_call_operand.vmem [shape: bf16[32,32], index: 6, kind: input, shape index: {}]
  %s7 = inlined_call_operand.vmem [shape: f32[64,32], index: 7, kind: input, shape index: {}]
  %s8 = inlined_call_operand.hbm [shape: bf16[32,32], index: 8, kind: input, shape index: {}]
  %s9 = inlined_call_operand.hbm [shape: f32[32,32], index: 9, kind: output, shape index: {0}]
  %s10 = inlined_call_operand.vmem [shape: f32[2,64,32], index: 10, kind: output, shape index: {1}]
  %11 = xla_tuple %s9, %s10
  %s12 = sld [smem:[#allocation0]]
  $region62: #{agent_attention.1} parent=0
    _
  %s14 = ssub.s32 1, %s12
  %s15 = scalar_select 0, %s14, %s12
  $region1: #{agent_attention.1} parent=0
    #allocation2 [shape = 'u8[512]{0}', space=vmem, size = 0x400, scoped, tag = 'input window, operand 2, single buffered']
    #allocation3 [shape = 's32[1]{0}', space=sflag, size = 0x4, scoped, tag = 'scoped memory for agent_attention.1']
    #allocation4 [shape = 's32[1]{0}', space=sflag, size = 0x4, scoped, tag = 'scoped memory for agent_attention.1']
    #allocation5 [shape = 'u8[8192]{0}', space=vmem, size = 0x2000, scoped, tag = 'input window, operand 8, single buffered']
    #allocation6 [shape = 's32[1]{0}', space=sflag, size = 0x4, scoped, tag = 'scoped memory for agent_attention.1']
    #allocation7 [shape = 'u8[16384]{0}', space=vmem, size = 0x4000, scoped, tag = 'output window, operand 0, single buffered']
    %16 = vsyncpa [#allocation3], 0
    %17 = vsyncpa [#allocation6], 0
    %18 = vsyncpa [#allocation4], 0
    // Predicated region
    $region2: #{agent_attention.1} parent=1 // pred_check
      _
    $region3: #{agent_attention.1} parent=1 // pred_check_branch
      %20 = sbr.rel (0) target = $region5
    $region4: #{agent_attention.1} parent=1 // pred_region
      _
    $region5: #{agent_attention.1} parent=1 // pred_fallthru
      _
    // Predicated region
    $region6: #{agent_attention.1} parent=1 // pred_check
      _
    $region7: #{agent_attention.1} parent=1 // pred_check_branch
      %22 = sbr.rel (0) target = $region9
    $region8: #{agent_attention.1} parent=1 // pred_region
      _
    $region9: #{agent_attention.1} parent=1 // pred_fallthru
      _
    // Predicated region
    $region10: #{agent_attention.1} parent=1 // pred_check
      _
    $region11: #{agent_attention.1} parent=1 // pred_check_branch
      %24 = sbr.rel (0) target = $region13
    $region12: #{agent_attention.1} parent=1 // pred_region
      %s26 = ssub.s32 16, 16
      %27 = vsyncadd [#allocation3], %s26
      %s29 = sshll.u32 [#allocation2], 4
      %s30 = int_to_ptr.vmem [resolvable:$true] %s29
      %32 = dma.hbm_to_vmem [thread:$0]  %s2, 16, %s30, [#allocation3]
    $region13: #{agent_attention.1} parent=1 // pred_fallthru
      _
    // Predicated region
    $region14: #{agent_attention.1} parent=1 // pred_check
      _
    $region15: #{agent_attention.1} parent=1 // pred_check_branch
      %34 = sbr.rel (0) target = $region17
    $region16: #{agent_attention.1} parent=1 // pred_region
      _
    $region17: #{agent_attention.1} parent=1 // pred_fallthru
      _
    // Predicated region
    $region18: #{agent_attention.1} parent=1 // pred_check
      _
    $region19: #{agent_attention.1} parent=1 // pred_check_branch
      %36 = sbr.rel (0) target = $region21
    $region20: #{agent_attention.1} parent=1 // pred_region
      _
    $region21: #{agent_attention.1} parent=1 // pred_fallthru
      _
    // Predicated region
    $region22: #{agent_attention.1} parent=1 // pred_check
      _
    $region23: #{agent_attention.1} parent=1 // pred_check_branch
      %38 = sbr.rel (0) target = $region25
    $region24: #{agent_attention.1} parent=1 // pred_region
      _
    $region25: #{agent_attention.1} parent=1 // pred_fallthru
      _
    // Predicated region
    $region26: #{agent_attention.1} parent=1 // pred_check
      _
    $region27: #{agent_attention.1} parent=1 // pred_check_branch
      %40 = sbr.rel (0) target = $region29
    $region28: #{agent_attention.1} parent=1 // pred_region
      _
    $region29: #{agent_attention.1} parent=1 // pred_fallthru
      _
    // Predicated region
    $region30: #{agent_attention.1} parent=1 // pred_check
      _
    $region31: #{agent_attention.1} parent=1 // pred_check_branch
      %42 = sbr.rel (0) target = $region33
    $region32: #{agent_attention.1} parent=1 // pred_region
      _
    $region33: #{agent_attention.1} parent=1 // pred_fallthru
      _
    // Predicated region
    $region34: #{agent_attention.1} parent=1 // pred_check
      _
    $region35: #{agent_attention.1} parent=1 // pred_check_branch
      %44 = sbr.rel (0) target = $region37
    $region36: #{agent_attention.1} parent=1 // pred_region
      %s46 = ssub.s32 256, 256
      %47 = vsyncadd [#allocation6], %s46
      %s48 = sshll.u32 [#allocation5], 4
      %s49 = int_to_ptr.vmem [resolvable:$true] %s48
      %54 = dma.hbm_to_vmem [thread:$0]  %s8, 256, %s49, [#allocation6], 64, 64, 4
    $region37: #{agent_attention.1} parent=1 // pred_fallthru
      _
    // Predicated region
    $region38: #{agent_attention.1} parent=1 // pred_check
      _
    $region39: #{agent_attention.1} parent=1 // pred_check_branch
      %56 = sbr.rel (0) target = $region41
    $region40: #{agent_attention.1} parent=1 // pred_region
      %57 = dma.done [#allocation3], 16
    $region41: #{agent_attention.1} parent=1 // pred_fallthru
      _
    // Predicated region
    $region42: #{agent_attention.1} parent=1 // pred_check
      _
    $region43: #{agent_attention.1} parent=1 // pred_check_branch
      %59 = sbr.rel (0) target = $region45
    $region44: #{agent_attention.1} parent=1 // pred_region
      %60 = dma.done [#allocation6], 256
    $region45: #{agent_attention.1} parent=1 // pred_fallthru
      _
    %v62 = vld [vmem:[%s0] sm:$0xf]
    %v63 = vld [vmem:[%s0 + $0x4] sm:$0xf]
    %v64 = vld [vmem:[%s0 + $0x8] sm:$0xf]
    %v65 = vld [vmem:[%s0 + $0xc] sm:$0xf]
    %v66 = vld [vmem:[%s1] sm:$0xf]
    %v67 = vld [vmem:[%s1 + $0x4] sm:$0xf]
    %v68 = vld [vmem:[%s1 + $0x8] sm:$0xf]
    %v69 = vld [vmem:[%s1 + $0xc] sm:$0xf]
    %v74 = vunpack.c.l.b16 %v62
    %v75 = vunpack.c.l.b16 %v63
    %v76 = vunpack.c.l.b16 %v64
    %v77 = vunpack.c.l.b16 %v65
    %v78 = vpack.c.b16 %v75, %v74
    %v79 = vpack.c.b16 %v77, %v76
    %v84 = vunpack.c.l.b16 %v66
    %v85 = vunpack.c.l.b16 %v67
    %v86 = vunpack.c.l.b16 %v68
    %v87 = vunpack.c.l.b16 %v69
    %v88 = vpack.c.b16 %v85, %v84
    %v89 = vpack.c.b16 %v87, %v86
    %vm92 = vcmask 261120
    %v94 = vsel %vm92, %v78, 0
    %v97 = vsel %vm92, %v79, 0
    %99 = vmatprep.subr.bf16.mxu0 0
    %100 = vmatpush1.bf16.msra.mxu0 0
    %101 = vmatprep.subr.bf16.mxu0 0
    %102 = vmatpush1.bf16.msra.mxu0 0
    %103 = vmatprep.subr.bf16.mxu0 0
    %104 = vmatpush1.bf16.msra.mxu0 0
    %105 = vmatprep.subr.bf16.mxu0 0
    %106 = vmatpush1.bf16.msra.mxu0 0
    %107 = vmatprep.subr.bf16.mxu0 0
    %108 = vmatpush1.bf16.msra.mxu0 0
    %109 = vmatprep.subr.bf16.mxu0 0
    %110 = vmatpush1.bf16.msra.mxu0 0
    %111 = vmatprep.subr.bf16.mxu0 0
    %112 = vmatpush1.bf16.msra.mxu0 %v89
    %113 = vmatprep.subr.bf16.mxu0 0
    %114 = vmatpush1.bf16.msra.mxu0 %v88
    %115 = vmatprep.subr.bf16.mxu0 0
    %116 = vmatpush2.bf16.msra.mxu0 0
    %117 = vmatprep.subr.bf16.mxu0 0
    %118 = vmatpush2.bf16.msra.mxu0 0
    %119 = vmatprep.subr.bf16.mxu0 0
    %120 = vmatpush2.bf16.msra.mxu0 0
    %121 = vmatprep.subr.bf16.mxu0 0
    %122 = vmatpush2.bf16.msra.mxu0 0
    %123 = vmatprep.subr.bf16.mxu0 0
    %124 = vmatpush2.bf16.msra.mxu0 0
    %125 = vmatprep.subr.bf16.mxu0 0
    %126 = vmatpush2.bf16.msra.mxu0 0
    %127 = vmatprep.subr.bf16.mxu0 0
    %128 = vmatpush2.bf16.msra.mxu0 0
    %129 = vmatprep.subr.bf16.mxu0 0
    %130 = vmatpush2.bf16.msra.mxu0 0
    %131 = vmatprep.mubr.bf16.mxu0 0
    %132 = vmatmul.mubr.bf16.gmra.mxu0 %v94
    %v133 = vpop.f32.mrf.mxu0
    %v134 = vadd.f32 0.0, %v133
    %v135 = vpop.f32.mrf.mxu0
    %v136 = vpop.f32.mrf.mxu0
    %v137 = vadd.f32 0.0, %v136
    %v138 = vpop.f32.mrf.mxu0
    %139 = vmatprep.mubr.bf16.mxu0 0
    %140 = vmatmul.mubr.bf16.gmra.mxu0 %v97
    %v141 = vpop.f32.mrf.mxu0
    %v142 = vadd.f32 0.0, %v141
    %v143 = vpop.f32.mrf.mxu0
    %v144 = vpop.f32.mrf.mxu0
    %v145 = vadd.f32 0.0, %v144
    %v146 = vpop.f32.mrf.mxu0
    %147 = vdwg.mxu0
    %v148 = vld [vmem:[#allocation2] sm:$0x1]
    %v150 = vlaneseq
    %v151 = vshrl.u32 %v150, 7
    %v152 = vsub.s32 0, %v151
    %v153 = vrot.slane %v148, %v152
    %154 = vrot.lane.b32.xlu0 %v153, 96
    %v155 = vpop.permute.xlu0 %154
    %v157 = vadd.f32 %v134, %v155
    %v158 = vadd.f32 %v137, %v155
    %v159 = vadd.f32 %v142, %v155
    %v160 = vadd.f32 %v145, %v155
    %v161 = vxor.u32 %v157, 2147483648
    %v162 = vxor.u32 %v158, 2147483648
    %v163 = vxor.u32 %v159, 2147483648
    %v164 = vxor.u32 %v160, 2147483648
    %v165 = vmul.f32 %v161, 1.442695
    %v166 = vpow.pop %v165
    %v167 = vmul.f32 %v162, 1.442695
    %v168 = vpow.pop %v167
    %v169 = vmul.f32 %v163, 1.442695
    %v170 = vpow.pop %v169
    %v171 = vmul.f32 %v164, 1.442695
    %v172 = vpow.pop %v171
    %v173 = vadd.f32 %v166, 1.0
    %v174 = vadd.f32 %v168, 1.0
    %v175 = vadd.f32 %v170, 1.0
    %v176 = vadd.f32 %v172, 1.0
    %v177 = vrcp.pop %v173
    %v178 = vmul.f32 1.0, %v177
    %v179 = vrcp.pop %v174
    %v180 = vmul.f32 1.0, %v179
    %v181 = vrcp.pop %v175
    %v182 = vmul.f32 1.0, %v181
    %v183 = vrcp.pop %v176
    %v184 = vmul.f32 1.0, %v183
    %v185 = vpack.c.bf16 %v137, %v134
    %v186 = vpack.c.bf16 %v145, %v142
    %v187 = vld [vmem:[%s3] sm:$0xf]
    %v188 = vld [vmem:[%s3 + $0x4] sm:$0xf]
    %v189 = vld [vmem:[%s3 + $0x8] sm:$0xf]
    %v190 = vld [vmem:[%s3 + $0xc] sm:$0xf]
    %v191 = vld [vmem:[%s3 + $0x10] sm:$0xf]
    %v192 = vld [vmem:[%s3 + $0x14] sm:$0xf]
    %v193 = vld [vmem:[%s3 + $0x18] sm:$0xf]
    %v194 = vld [vmem:[%s3 + $0x1c] sm:$0xf]
    %v203 = vunpack.c.l.b16 %v187
    %v204 = vunpack.c.l.b16 %v188
    %v205 = vunpack.c.l.b16 %v189
    %v206 = vunpack.c.l.b16 %v190
    %v207 = vunpack.c.l.b16 %v191
    %v208 = vunpack.c.l.b16 %v192
    %v209 = vunpack.c.l.b16 %v193
    %v210 = vunpack.c.l.b16 %v194
    %v211 = vpack.c.b16 %v204, %v203
    %v212 = vpack.c.b16 %v206, %v205
    %v213 = vpack.c.b16 %v208, %v207
    %v214 = vpack.c.b16 %v210, %v209
    %vm219 = vcmask 523264
    %v221 = vsel %vm219, %v185, 0
    %v224 = vsel %vm219, %v186, 0
    %226 = vmatprep.subr.bf16.mxu0 0
    %227 = vmatpush1.bf16.msra.mxu0 0
    %228 = vmatprep.subr.bf16.mxu0 0
    %229 = vmatpush1.bf16.msra.mxu0 0
    %230 = vmatprep.subr.bf16.mxu0 0
    %231 = vmatpush1.bf16.msra.mxu0 0
    %232 = vmatprep.subr.bf16.mxu0 0
    %233 = vmatpush1.bf16.msra.mxu0 0
    %234 = vmatprep.subr.bf16.mxu0 0
    %235 = vmatpush1.bf16.msra.mxu0 %v214
    %236 = vmatprep.subr.bf16.mxu0 0
    %237 = vmatpush1.bf16.msra.mxu0 %v213
    %238 = vmatprep.subr.bf16.mxu0 0
    %239 = vmatpush1.bf16.msra.mxu0 %v212
    %240 = vmatprep.subr.bf16.mxu0 0
    %241 = vmatpush1.bf16.msra.mxu0 %v211
    %242 = vmatprep.subr.bf16.mxu0 0
    %243 = vmatpush2.bf16.msra.mxu0 0
    %244 = vmatprep.subr.bf16.mxu0 0
    %245 = vmatpush2.bf16.msra.mxu0 0
    %246 = vmatprep.subr.bf16.mxu0 0
    %247 = vmatpush2.bf16.msra.mxu0 0
    %248 = vmatprep.subr.bf16.mxu0 0
    %249 = vmatpush2.bf16.msra.mxu0 0
    %250 = vmatprep.subr.bf16.mxu0 0
    %251 = vmatpush2.bf16.msra.mxu0 0
    %252 = vmatprep.subr.bf16.mxu0 0
    %253 = vmatpush2.bf16.msra.mxu0 0
    %254 = vmatprep.subr.bf16.mxu0 0
    %255 = vmatpush2.bf16.msra.mxu0 0
    %256 = vmatprep.subr.bf16.mxu0 0
    %257 = vmatpush2.bf16.msra.mxu0 0
    %258 = vmatprep.mubr.bf16.mxu0 0
    %259 = vmatmul.mubr.bf16.gmra.mxu0 %v221
    %v260 = vpop.f32.mrf.mxu0
    %v261 = vadd.f32 0.0, %v260
    %v262 = vpop.f32.mrf.mxu0
    %v263 = vpop.f32.mrf.mxu0
    %v264 = vadd.f32 0.0, %v263
    %v265 = vpop.f32.mrf.mxu0
    %266 = vmatprep.mubr.bf16.mxu0 0
    %267 = vmatmul.mubr.bf16.gmra.mxu0 %v224
    %v268 = vpop.f32.mrf.mxu0
    %v269 = vadd.f32 0.0, %v268
    %v270 = vpop.f32.mrf.mxu0
    %v271 = vpop.f32.mrf.mxu0
    %v272 = vadd.f32 0.0, %v271
    %v273 = vpop.f32.mrf.mxu0
    %274 = vdwg.mxu0
    %v275 = vsel %vm219, %v261, -inf
    %276 = vmax.xlane.f32.xlu0 %v275
    %v277 = vpop.xlane.xlu0 %276
    %v278 = vsel %vm219, %v264, -inf
    %279 = vmax.xlane.f32.xlu0 %v278
    %v280 = vpop.xlane.xlu0 %279
    %v281 = vsel %vm219, %v269, -inf
    %282 = vmax.xlane.f32.xlu0 %v281
    %v283 = vpop.xlane.xlu0 %282
    %v284 = vsel %vm219, %v272, -inf
    %285 = vmax.xlane.f32.xlu0 %v284
    %v286 = vpop.xlane.xlu0 %285
    %v287 = vsub.f32 %v261, %v277
    %v288 = vsub.f32 %v264, %v280
    %v289 = vsub.f32 %v269, %v283
    %v290 = vsub.f32 %v272, %v286
    %v291 = vmul.f32 %v287, 1.442695
    %v292 = vpow.pop %v291
    %v293 = vmul.f32 %v288, 1.442695
    %v294 = vpow.pop %v293
    %v295 = vmul.f32 %v289, 1.442695
    %v296 = vpow.pop %v295
    %v297 = vmul.f32 %v290, 1.442695
    %v298 = vpow.pop %v297
    %v299 = vpack.c.bf16 %v294, %v292
    %v300 = vpack.c.bf16 %v298, %v296
    %v301 = vld [vmem:[%s5] sm:$0xf]
    %v302 = vld [vmem:[%s5 + $0x4] sm:$0xf]
    %v303 = vld [vmem:[%s5 + $0x8] sm:$0xf]
    %v304 = vld [vmem:[%s5 + $0xc] sm:$0xf]
    %v305 = vld [vmem:[%s5 + $0x10] sm:$0xf]
    %v306 = vld [vmem:[%s5 + $0x14] sm:$0xf]
    %v307 = vld [vmem:[%s5 + $0x18] sm:$0xf]
    %v308 = vld [vmem:[%s5 + $0x1c] sm:$0xf]
    %v317 = vunpack.c.l.b16 %v301
    %v318 = vunpack.c.l.b16 %v302
    %v319 = vunpack.c.l.b16 %v303
    %v320 = vunpack.c.l.b16 %v304
    %v321 = vunpack.c.l.b16 %v305
    %v322 = vunpack.c.l.b16 %v306
    %v323 = vunpack.c.l.b16 %v307
    %v324 = vunpack.c.l.b16 %v308
    %v325 = vpack.c.b16 %v318, %v317
    %v326 = vpack.c.b16 %v320, %v319
    %v327 = vpack.c.b16 %v322, %v321
    %v328 = vpack.c.b16 %v324, %v323
    %v334 = vsel %vm219, %v299, 0
    %v337 = vsel %vm219, %v300, 0
    %339 = vmatprep.subr.bf16.mxu0 0
    %340 = vmatpush1.bf16.msra.mxu0 0
    %341 = vmatprep.subr.bf16.mxu0 0
    %342 = vmatpush1.bf16.msra.mxu0 0
    %343 = vmatprep.subr.bf16.mxu0 0
    %344 = vmatpush1.bf16.msra.mxu0 0
    %345 = vmatprep.subr.bf16.mxu0 0
    %346 = vmatpush1.bf16.msra.mxu0 0
    %347 = vmatprep.subr.bf16.mxu0 0
    %348 = vmatpush1.bf16.msra.mxu0 %v328
    %349 = vmatprep.subr.bf16.mxu0 0
    %350 = vmatpush1.bf16.msra.mxu0 %v327
    %351 = vmatprep.subr.bf16.mxu0 0
    %352 = vmatpush1.bf16.msra.mxu0 %v326
    %353 = vmatprep.subr.bf16.mxu0 0
    %354 = vmatpush1.bf16.msra.mxu0 %v325
    %355 = vmatprep.subr.bf16.mxu0 0
    %356 = vmatpush2.bf16.msra.mxu0 0
    %357 = vmatprep.subr.bf16.mxu0 0
    %358 = vmatpush2.bf16.msra.mxu0 0
    %359 = vmatprep.subr.bf16.mxu0 0
    %360 = vmatpush2.bf16.msra.mxu0 0
    %361 = vmatprep.subr.bf16.mxu0 0
    %362 = vmatpush2.bf16.msra.mxu0 0
    %363 = vmatprep.subr.bf16.mxu0 0
    %364 = vmatpush2.bf16.msra.mxu0 0
    %365 = vmatprep.subr.bf16.mxu0 0
    %366 = vmatpush2.bf16.msra.mxu0 0
    %367 = vmatprep.subr.bf16.mxu0 0
    %368 = vmatpush2.bf16.msra.mxu0 0
    %369 = vmatprep.subr.bf16.mxu0 0
    %370 = vmatpush2.bf16.msra.mxu0 0
    %371 = vmatprep.mubr.bf16.mxu0 0
    %372 = vmatmul.mubr.bf16.gmra.mxu0 %v334
    %v373 = vpop.f32.mrf.mxu0
    %v374 = vadd.f32 0.0, %v373
    %v375 = vpop.f32.mrf.mxu0
    %v376 = vpop.f32.mrf.mxu0
    %v377 = vadd.f32 0.0, %v376
    %v378 = vpop.f32.mrf.mxu0
    %379 = vmatprep.mubr.bf16.mxu0 0
    %380 = vmatmul.mubr.bf16.gmra.mxu0 %v337
    %v381 = vpop.f32.mrf.mxu0
    %v382 = vadd.f32 0.0, %v381
    %v383 = vpop.f32.mrf.mxu0
    %v384 = vpop.f32.mrf.mxu0
    %v385 = vadd.f32 0.0, %v384
    %v386 = vpop.f32.mrf.mxu0
    %387 = vdwg.mxu0
    %v388 = vrcp.pop %v374
    %v389 = vrcp.pop %v377
    %v390 = vrcp.pop %v382
    %v391 = vrcp.pop %v385
    %v392 = vmul.f32 %v292, %v388
    %v393 = vmul.f32 %v294, %v389
    %v394 = vmul.f32 %v296, %v390
    %v395 = vmul.f32 %v298, %v391
    %vm396 = vcmask 1048064
    %v397 = vsel %vm396, %v261, -inf
    %v398 = vsel %vm396, %v264, -inf
    %v399 = vsel %vm396, %v269, -inf
    %v400 = vsel %vm396, %v272, -inf
    %v401 = vmax.f32 %v397, %v398
    %v402 = vmax.f32 %v399, %v400
    %v403 = vmax.f32 %v401, %v402
    %v404 = vrot.slane %v403, 4
    %v405 = vmax.f32 %v403, %v404
    %v406 = vrot.slane %v405, 2
    %v407 = vmax.f32 %v405, %v406
    %v408 = vrot.slane %v407, 1
    %v409 = vmax.f32 %v407, %v408
    %v410 = vsub.f32 %v261, %v409
    %v411 = vsub.f32 %v264, %v409
    %v412 = vsub.f32 %v269, %v409
    %v413 = vsub.f32 %v272, %v409
    %v414 = vmul.f32 %v410, 1.442695
    %v415 = vpow.pop %v414
    %v416 = vmul.f32 %v411, 1.442695
    %v417 = vpow.pop %v416
    %v418 = vmul.f32 %v412, 1.442695
    %v419 = vpow.pop %v418
    %v420 = vmul.f32 %v413, 1.442695
    %v421 = vpow.pop %v420
    %v422 = vld [vmem:[%s6] sm:$0xf]
    %v423 = vld [vmem:[%s6 + $0x4] sm:$0xf]
    %v424 = vld [vmem:[%s6 + $0x8] sm:$0xf]
    %v425 = vld [vmem:[%s6 + $0xc] sm:$0xf]
    %v426 = vpack.c.bf16 %v417, %v415
    %v427 = vpack.c.bf16 %v421, %v419
    %v432 = vunpack.c.l.b16 %v422
    %v433 = vunpack.c.l.b16 %v423
    %v434 = vunpack.c.l.b16 %v424
    %v435 = vunpack.c.l.b16 %v425
    %v436 = vpack.c.b16 %v433, %v432
    %v437 = vpack.c.b16 %v435, %v434
    %440 = vrot.lane.b32.xlu0 %v426, 64
    %v441 = vpop.permute.xlu0 %440
    %442 = vrot.lane.b32.xlu0 %v427, 64
    %v443 = vpop.permute.xlu0 %442
    %v447 = vsel %vm92, %v436, 0
    %v450 = vsel %vm92, %v437, 0
    %452 = vmatprep.subr.bf16.mxu0 0
    %453 = vmatpush1.bf16.msra.mxu0 0
    %454 = vmatprep.subr.bf16.mxu0 0
    %455 = vmatpush1.bf16.msra.mxu0 0
    %456 = vmatprep.subr.bf16.mxu0 0
    %457 = vmatpush1.bf16.msra.mxu0 0
    %458 = vmatprep.subr.bf16.mxu0 0
    %459 = vmatpush1.bf16.msra.mxu0 0
    %460 = vmatprep.subr.bf16.mxu0 0
    %461 = vmatpush1.bf16.msra.mxu0 0
    %462 = vmatprep.subr.bf16.mxu0 0
    %463 = vmatpush1.bf16.msra.mxu0 0
    %464 = vmatprep.subr.bf16.mxu0 0
    %465 = vmatpush1.bf16.msra.mxu0 %v443
    %466 = vmatprep.subr.bf16.mxu0 0
    %467 = vmatpush1.bf16.msra.mxu0 %v441
    %468 = vmatprep.subr.bf16.mxu0 0
    %469 = vmatpush2.bf16.msra.mxu0 0
    %470 = vmatprep.subr.bf16.mxu0 0
    %471 = vmatpush2.bf16.msra.mxu0 0
    %472 = vmatprep.subr.bf16.mxu0 0
    %473 = vmatpush2.bf16.msra.mxu0 0
    %474 = vmatprep.subr.bf16.mxu0 0
    %475 = vmatpush2.bf16.msra.mxu0 0
    %476 = vmatprep.subr.bf16.mxu0 0
    %477 = vmatpush2.bf16.msra.mxu0 0
    %478 = vmatprep.subr.bf16.mxu0 0
    %479 = vmatpush2.bf16.msra.mxu0 0
    %480 = vmatprep.subr.bf16.mxu0 0
    %481 = vmatpush2.bf16.msra.mxu0 0
    %482 = vmatprep.subr.bf16.mxu0 0
    %483 = vmatpush2.bf16.msra.mxu0 0
    %484 = vmatprep.mubr.bf16.mxu0 0
    %485 = vmatmul.mubr.bf16.gmra.mxu0 %v447
    %v486 = vpop.f32.mrf.mxu0
    %v487 = vadd.f32 0.0, %v486
    %v488 = vpop.f32.mrf.mxu0
    %v489 = vpop.f32.mrf.mxu0
    %v490 = vadd.f32 0.0, %v489
    %v491 = vpop.f32.mrf.mxu0
    %492 = vmatprep.mubr.bf16.mxu0 0
    %493 = vmatmul.mubr.bf16.gmra.mxu0 %v450
    %v494 = vpop.f32.mrf.mxu0
    %v495 = vadd.f32 0.0, %v494
    %v496 = vpop.f32.mrf.mxu0
    %v497 = vpop.f32.mrf.mxu0
    %v498 = vadd.f32 0.0, %v497
    %v499 = vpop.f32.mrf.mxu0
    %500 = vdwg.mxu0
    %v501 = vrcp.pop %v487
    %v502 = vrcp.pop %v490
    %v503 = vrcp.pop %v495
    %v504 = vrcp.pop %v498
    %509 = vrot.lane.b32.xlu0 %v501, 64
    %v510 = vpop.permute.xlu0 %509
    %511 = vrot.lane.b32.xlu0 %v502, 64
    %v512 = vpop.permute.xlu0 %511
    %513 = vrot.lane.b32.xlu0 %v503, 64
    %v514 = vpop.permute.xlu0 %513
    %515 = vrot.lane.b32.xlu0 %v504, 64
    %v516 = vpop.permute.xlu0 %515
    %v521 = vmul.f32 %v415, %v510
    %v522 = vmul.f32 %v417, %v512
    %v523 = vmul.f32 %v419, %v514
    %v524 = vmul.f32 %v421, %v516
    %v525 = vsel %vm219, %v392, %v521
    %v526 = vsel %vm219, %v393, %v522
    %v527 = vsel %vm219, %v394, %v523
    %v528 = vsel %vm219, %v395, %v524
    %v529 = vpack.c.bf16 %v526, %v525
    %v530 = vpack.c.bf16 %v528, %v527
    %v531 = vld [vmem:[%s4] sm:$0xf]
    %v532 = vld [vmem:[%s4 + $0x4] sm:$0xf]
    %v533 = vld [vmem:[%s4 + $0x8] sm:$0xf]
    %v534 = vld [vmem:[%s4 + $0xc] sm:$0xf]
    %v535 = vld [vmem:[%s4 + $0x10] sm:$0xf]
    %v536 = vld [vmem:[%s4 + $0x14] sm:$0xf]
    %v537 = vld [vmem:[%s4 + $0x18] sm:$0xf]
    %v538 = vld [vmem:[%s4 + $0x1c] sm:$0xf]
    %v539 = vld [vmem:[%s4 + $0x20] sm:$0xf]
    %v540 = vld [vmem:[%s4 + $0x24] sm:$0xf]
    %v541 = vld [vmem:[%s4 + $0x28] sm:$0xf]
    %v542 = vld [vmem:[%s4 + $0x2c] sm:$0xf]
    %v543 = vld [vmem:[%s4 + $0x30] sm:$0xf]
    %v544 = vld [vmem:[%s4 + $0x34] sm:$0xf]
    %v545 = vld [vmem:[%s4 + $0x38] sm:$0xf]
    %v546 = vld [vmem:[%s4 + $0x3c] sm:$0xf]
    %v563 = vunpack.c.l.b16 %v531
    %v564 = vunpack.c.l.b16 %v532
    %v565 = vunpack.c.l.b16 %v533
    %v566 = vunpack.c.l.b16 %v534
    %v567 = vunpack.c.l.b16 %v535
    %v568 = vunpack.c.l.b16 %v536
    %v569 = vunpack.c.l.b16 %v537
    %v570 = vunpack.c.l.b16 %v538
    %v571 = vunpack.c.l.b16 %v539
    %v572 = vunpack.c.l.b16 %v540
    %v573 = vunpack.c.l.b16 %v541
    %v574 = vunpack.c.l.b16 %v542
    %v575 = vunpack.c.l.b16 %v543
    %v576 = vunpack.c.l.b16 %v544
    %v577 = vunpack.c.l.b16 %v545
    %v578 = vunpack.c.l.b16 %v546
    %v579 = vpack.c.b16 %v564, %v563
    %v580 = vpack.c.b16 %v566, %v565
    %v581 = vpack.c.b16 %v568, %v567
    %v582 = vpack.c.b16 %v570, %v569
    %v583 = vpack.c.b16 %v572, %v571
    %v584 = vpack.c.b16 %v574, %v573
    %v585 = vpack.c.b16 %v576, %v575
    %v586 = vpack.c.b16 %v578, %v577
    %595 = vmatprep.subr.bf16.mxu0 0
    %596 = vmatpush1.bf16.msra.mxu0 %v586
    %597 = vmatprep.subr.bf16.mxu0 0
    %598 = vmatpush1.bf16.msra.mxu0 %v585
    %599 = vmatprep.subr.bf16.mxu0 0
    %600 = vmatpush1.bf16.msra.mxu0 %v584
    %601 = vmatprep.subr.bf16.mxu0 0
    %602 = vmatpush1.bf16.msra.mxu0 %v583
    %603 = vmatprep.subr.bf16.mxu0 0
    %604 = vmatpush1.bf16.msra.mxu0 %v582
    %605 = vmatprep.subr.bf16.mxu0 0
    %606 = vmatpush1.bf16.msra.mxu0 %v581
    %607 = vmatprep.subr.bf16.mxu0 0
    %608 = vmatpush1.bf16.msra.mxu0 %v580
    %609 = vmatprep.subr.bf16.mxu0 0
    %610 = vmatpush1.bf16.msra.mxu0 %v579
    %611 = vmatprep.subr.bf16.mxu0 0
    %612 = vmatpush2.bf16.msra.mxu0 0
    %613 = vmatprep.subr.bf16.mxu0 0
    %614 = vmatpush2.bf16.msra.mxu0 0
    %615 = vmatprep.subr.bf16.mxu0 0
    %616 = vmatpush2.bf16.msra.mxu0 0
    %617 = vmatprep.subr.bf16.mxu0 0
    %618 = vmatpush2.bf16.msra.mxu0 0
    %619 = vmatprep.subr.bf16.mxu0 0
    %620 = vmatpush2.bf16.msra.mxu0 0
    %621 = vmatprep.subr.bf16.mxu0 0
    %622 = vmatpush2.bf16.msra.mxu0 0
    %623 = vmatprep.subr.bf16.mxu0 0
    %624 = vmatpush2.bf16.msra.mxu0 0
    %625 = vmatprep.subr.bf16.mxu0 0
    %626 = vmatpush2.bf16.msra.mxu0 0
    %627 = vmatprep.mubr.bf16.mxu0 0
    %628 = vmatmul.mubr.bf16.gmra.mxu0 %v529
    %v629 = vpop.f32.mrf.mxu0
    %v630 = vadd.f32 0.0, %v629
    %v631 = vpop.f32.mrf.mxu0
    %v632 = vpop.f32.mrf.mxu0
    %v633 = vadd.f32 0.0, %v632
    %v634 = vpop.f32.mrf.mxu0
    %635 = vmatprep.mubr.bf16.mxu0 0
    %636 = vmatmul.mubr.bf16.gmra.mxu0 %v530
    %v637 = vpop.f32.mrf.mxu0
    %v638 = vadd.f32 0.0, %v637
    %v639 = vpop.f32.mrf.mxu0
    %v640 = vpop.f32.mrf.mxu0
    %v641 = vadd.f32 0.0, %v640
    %v642 = vpop.f32.mrf.mxu0
    %643 = vdwg.mxu0
    %v644 = vpack.c.bf16 %v633, %v630
    %v645 = vpack.c.bf16 %v641, %v638
    %647 = vrot.lane.b32.xlu0 %v644, 64
    %v648 = vpop.permute.xlu0 %647
    %650 = vxpose.xlu0.c.b16.start [1/8] %v648, 128
    %651 = vxpose.xlu0.c.b16.cont [2/8] 0, 128
    %652 = vxpose.xlu0.c.b16.cont [3/8] 0, 128
    %653 = vxpose.xlu0.c.b16.cont [4/8] 0, 128
    %654 = vxpose.xlu0.c.b16.cont [5/8] 0, 128
    %655 = vxpose.xlu0.c.b16.cont [6/8] 0, 128
    %656 = vxpose.xlu0.c.b16.cont [7/8] 0, 128
    %657 = vxpose.xlu0.c.b16.end [8/8] 0, 128
    %v658 = vpop.trf.xlu0
    %v659 = vpop.trf.xlu0
    %v660 = vpop.trf.xlu0
    %v661 = vpop.trf.xlu0
    %v662 = vpop.trf.xlu0
    %v663 = vpop.trf.xlu0
    %v664 = vpop.trf.xlu0
    %v665 = vpop.trf.xlu0
    %667 = vrot.lane.b32.xlu0 %v185, 64
    %v668 = vpop.permute.xlu0 %667
    %vm670 = vcmask 130048
    %v672 = vsel %vm670, %v658, 0
    %v675 = vsel %vm670, %v659, 0
    %v678 = vsel %vm670, %v660, 0
    %v681 = vsel %vm670, %v661, 0
    %683 = vmatprep.subr.bf16.mxu0 0
    %684 = vmatpush1.bf16.msra.mxu0 0
    %685 = vmatprep.subr.bf16.mxu0 0
    %686 = vmatpush1.bf16.msra.mxu0 0
    %687 = vmatprep.subr.bf16.mxu0 0
    %688 = vmatpush1.bf16.msra.mxu0 0
    %689 = vmatprep.subr.bf16.mxu0 0
    %690 = vmatpush1.bf16.msra.mxu0 0
    %691 = vmatprep.subr.bf16.mxu0 0
    %692 = vmatpush1.bf16.msra.mxu0 0
    %693 = vmatprep.subr.bf16.mxu0 0
    %694 = vmatpush1.bf16.msra.mxu0 0
    %695 = vmatprep.subr.bf16.mxu0 0
    %696 = vmatpush1.bf16.msra.mxu0 0
    %697 = vmatprep.subr.bf16.mxu0 0
    %698 = vmatpush1.bf16.msra.mxu0 %v668
    %699 = vmatprep.subr.bf16.mxu0 0
    %700 = vmatpush2.bf16.msra.mxu0 0
    %701 = vmatprep.subr.bf16.mxu0 0
    %702 = vmatpush2.bf16.msra.mxu0 0
    %703 = vmatprep.subr.bf16.mxu0 0
    %704 = vmatpush2.bf16.msra.mxu0 0
    %705 = vmatprep.subr.bf16.mxu0 0
    %706 = vmatpush2.bf16.msra.mxu0 0
    %707 = vmatprep.subr.bf16.mxu0 0
    %708 = vmatpush2.bf16.msra.mxu0 0
    %709 = vmatprep.subr.bf16.mxu0 0
    %710 = vmatpush2.bf16.msra.mxu0 0
    %711 = vmatprep.subr.bf16.mxu0 0
    %712 = vmatpush2.bf16.msra.mxu0 0
    %713 = vmatprep.subr.bf16.mxu0 0
    %714 = vmatpush2.bf16.msra.mxu0 0
    %715 = vmatprep.mubr.bf16.mxu0 0
    %716 = vmatmul.mubr.bf16.gmra.mxu0 %v672
    %v717 = vpop.f32.mrf.mxu0
    %v718 = vadd.f32 0.0, %v717
    %v719 = vpop.f32.mrf.mxu0
    %v720 = vpop.f32.mrf.mxu0
    %v721 = vadd.f32 0.0, %v720
    %v722 = vpop.f32.mrf.mxu0
    %723 = vmatprep.mubr.bf16.mxu0 0
    %724 = vmatmul.mubr.bf16.gmra.mxu0 %v675
    %v725 = vpop.f32.mrf.mxu0
    %v726 = vadd.f32 0.0, %v725
    %v727 = vpop.f32.mrf.mxu0
    %v728 = vpop.f32.mrf.mxu0
    %v729 = vadd.f32 0.0, %v728
    %v730 = vpop.f32.mrf.mxu0
    %731 = vmatprep.mubr.bf16.mxu0 0
    %732 = vmatmul.mubr.bf16.gmra.mxu0 %v678
    %v733 = vpop.f32.mrf.mxu0
    %v734 = vadd.f32 0.0, %v733
    %v735 = vpop.f32.mrf.mxu0
    %v736 = vpop.f32.mrf.mxu0
    %v737 = vadd.f32 0.0, %v736
    %v738 = vpop.f32.mrf.mxu0
    %739 = vmatprep.mubr.bf16.mxu0 0
    %740 = vmatmul.mubr.bf16.gmra.mxu0 %v681
    %v741 = vpop.f32.mrf.mxu0
    %v742 = vadd.f32 0.0, %v741
    %v743 = vpop.f32.mrf.mxu0
    %v744 = vpop.f32.mrf.mxu0
    %v745 = vadd.f32 0.0, %v744
    %v746 = vpop.f32.mrf.mxu0
    %747 = vdwg.mxu0
    %v748 = vld [vmem:[%s7] sm:$0xff]
    %v749 = vld [vmem:[%s7 + $0x8] sm:$0xff]
    %v750 = vld [vmem:[%s7 + $0x10] sm:$0xff]
    %v751 = vld [vmem:[%s7 + $0x18] sm:$0xff]
    %v752 = vld [vmem:[%s7 + $0x20] sm:$0xff]
    %v753 = vld [vmem:[%s7 + $0x28] sm:$0xff]
    %v754 = vld [vmem:[%s7 + $0x30] sm:$0xff]
    %v755 = vld [vmem:[%s7 + $0x38] sm:$0xff]
    %v756 = vmul.f32 %v718, %v748
    %v757 = vmul.f32 %v721, %v749
    %v758 = vmul.f32 %v726, %v750
    %v759 = vmul.f32 %v729, %v751
    %v760 = vmul.f32 %v734, %v752
    %v761 = vmul.f32 %v737, %v753
    %v762 = vmul.f32 %v742, %v754
    %v763 = vmul.f32 %v745, %v755
    %764 = vst.msk [vmem:[%s10] sm:$0xff] %vm92, %v756
    %765 = vst.msk [vmem:[%s10 + $0x8] sm:$0xff] %vm92, %v757
    %766 = vst.msk [vmem:[%s10 + $0x10] sm:$0xff] %vm92, %v758
    %767 = vst.msk [vmem:[%s10 + $0x18] sm:$0xff] %vm92, %v759
    %768 = vst.msk [vmem:[%s10 + $0x20] sm:$0xff] %vm92, %v760
    %769 = vst.msk [vmem:[%s10 + $0x28] sm:$0xff] %vm92, %v761
    %770 = vst.msk [vmem:[%s10 + $0x30] sm:$0xff] %vm92, %v762
    %771 = vst.msk [vmem:[%s10 + $0x38] sm:$0xff] %vm92, %v763
    %v772 = vpack.c.bf16 %v757, %v756
    %v773 = vpack.c.bf16 %v759, %v758
    %v774 = vpack.c.bf16 %v761, %v760
    %v775 = vpack.c.bf16 %v763, %v762
    %v777 = vsel %vm219, %v644, 0
    %779 = vmatprep.subr.bf16.mxu0 0
    %780 = vmatpush1.bf16.msra.mxu0 0
    %781 = vmatprep.subr.bf16.mxu0 0
    %782 = vmatpush1.bf16.msra.mxu0 0
    %783 = vmatprep.subr.bf16.mxu0 0
    %784 = vmatpush1.bf16.msra.mxu0 0
    %785 = vmatprep.subr.bf16.mxu0 0
    %786 = vmatpush1.bf16.msra.mxu0 0
    %787 = vmatprep.subr.bf16.mxu0 0
    %788 = vmatpush1.bf16.msra.mxu0 %v775
    %789 = vmatprep.subr.bf16.mxu0 0
    %790 = vmatpush1.bf16.msra.mxu0 %v774
    %791 = vmatprep.subr.bf16.mxu0 0
    %792 = vmatpush1.bf16.msra.mxu0 %v773
    %793 = vmatprep.subr.bf16.mxu0 0
    %794 = vmatpush1.bf16.msra.mxu0 %v772
    %795 = vmatprep.subr.bf16.mxu0 0
    %796 = vmatpush2.bf16.msra.mxu0 0
    %797 = vmatprep.subr.bf16.mxu0 0
    %798 = vmatpush2.bf16.msra.mxu0 0
    %799 = vmatprep.subr.bf16.mxu0 0
    %800 = vmatpush2.bf16.msra.mxu0 0
    %801 = vmatprep.subr.bf16.mxu0 0
    %802 = vmatpush2.bf16.msra.mxu0 0
    %803 = vmatprep.subr.bf16.mxu0 0
    %804 = vmatpush2.bf16.msra.mxu0 0
    %805 = vmatprep.subr.bf16.mxu0 0
    %806 = vmatpush2.bf16.msra.mxu0 0
    %807 = vmatprep.subr.bf16.mxu0 0
    %808 = vmatpush2.bf16.msra.mxu0 0
    %809 = vmatprep.subr.bf16.mxu0 0
    %810 = vmatpush2.bf16.msra.mxu0 0
    %811 = vmatprep.mubr.bf16.mxu0 0
    %812 = vmatmul.mubr.bf16.gmra.mxu0 %v777
    %v813 = vpop.f32.mrf.mxu0
    %v814 = vadd.f32 0.0, %v813
    %v815 = vpop.f32.mrf.mxu0
    %v816 = vpop.f32.mrf.mxu0
    %v817 = vadd.f32 0.0, %v816
    %v818 = vpop.f32.mrf.mxu0
    %819 = vdwg.mxu0
    %821 = vrot.lane.b32.xlu0 %v645, 64
    %v822 = vpop.permute.xlu0 %821
    %824 = vxpose.xlu0.c.b16.start [1/8] %v822, 128
    %825 = vxpose.xlu0.c.b16.cont [2/8] 0, 128
    %826 = vxpose.xlu0.c.b16.cont [3/8] 0, 128
    %827 = vxpose.xlu0.c.b16.cont [4/8] 0, 128
    %828 = vxpose.xlu0.c.b16.cont [5/8] 0, 128
    %829 = vxpose.xlu0.c.b16.cont [6/8] 0, 128
    %830 = vxpose.xlu0.c.b16.cont [7/8] 0, 128
    %831 = vxpose.xlu0.c.b16.end [8/8] 0, 128
    %v832 = vpop.trf.xlu0
    %v833 = vpop.trf.xlu0
    %v834 = vpop.trf.xlu0
    %v835 = vpop.trf.xlu0
    %v836 = vpop.trf.xlu0
    %v837 = vpop.trf.xlu0
    %v838 = vpop.trf.xlu0
    %v839 = vpop.trf.xlu0
    %841 = vrot.lane.b32.xlu0 %v186, 64
    %v842 = vpop.permute.xlu0 %841
    %v845 = vsel %vm670, %v832, 0
    %v848 = vsel %vm670, %v833, 0
    %v851 = vsel %vm670, %v834, 0
    %v854 = vsel %vm670, %v835, 0
    %856 = vmatprep.subr.bf16.mxu0 0
    %857 = vmatpush1.bf16.msra.mxu0 0
    %858 = vmatprep.subr.bf16.mxu0 0
    %859 = vmatpush1.bf16.msra.mxu0 0
    %860 = vmatprep.subr.bf16.mxu0 0
    %861 = vmatpush1.bf16.msra.mxu0 0
    %862 = vmatprep.subr.bf16.mxu0 0
    %863 = vmatpush1.bf16.msra.mxu0 0
    %864 = vmatprep.subr.bf16.mxu0 0
    %865 = vmatpush1.bf16.msra.mxu0 0
    %866 = vmatprep.subr.bf16.mxu0 0
    %867 = vmatpush1.bf16.msra.mxu0 0
    %868 = vmatprep.subr.bf16.mxu0 0
    %869 = vmatpush1.bf16.msra.mxu0 0
    %870 = vmatprep.subr.bf16.mxu0 0
    %871 = vmatpush1.bf16.msra.mxu0 %v842
    %872 = vmatprep.subr.bf16.mxu0 0
    %873 = vmatpush2.bf16.msra.mxu0 0
    %874 = vmatprep.subr.bf16.mxu0 0
    %875 = vmatpush2.bf16.msra.mxu0 0
    %876 = vmatprep.subr.bf16.mxu0 0
    %877 = vmatpush2.bf16.msra.mxu0 0
    %878 = vmatprep.subr.bf16.mxu0 0
    %879 = vmatpush2.bf16.msra.mxu0 0
    %880 = vmatprep.subr.bf16.mxu0 0
    %881 = vmatpush2.bf16.msra.mxu0 0
    %882 = vmatprep.subr.bf16.mxu0 0
    %883 = vmatpush2.bf16.msra.mxu0 0
    %884 = vmatprep.subr.bf16.mxu0 0
    %885 = vmatpush2.bf16.msra.mxu0 0
    %886 = vmatprep.subr.bf16.mxu0 0
    %887 = vmatpush2.bf16.msra.mxu0 0
    %888 = vmatprep.mubr.bf16.mxu0 0
    %889 = vmatmul.mubr.bf16.gmra.mxu0 %v845
    %v890 = vpop.f32.mrf.mxu0
    %v891 = vadd.f32 0.0, %v890
    %v892 = vpop.f32.mrf.mxu0
    %v893 = vpop.f32.mrf.mxu0
    %v894 = vadd.f32 0.0, %v893
    %v895 = vpop.f32.mrf.mxu0
    %896 = vmatprep.mubr.bf16.mxu0 0
    %897 = vmatmul.mubr.bf16.gmra.mxu0 %v848
    %v898 = vpop.f32.mrf.mxu0
    %v899 = vadd.f32 0.0, %v898
    %v900 = vpop.f32.mrf.mxu0
    %v901 = vpop.f32.mrf.mxu0
    %v902 = vadd.f32 0.0, %v901
    %v903 = vpop.f32.mrf.mxu0
    %904 = vmatprep.mubr.bf16.mxu0 0
    %905 = vmatmul.mubr.bf16.gmra.mxu0 %v851
    %v906 = vpop.f32.mrf.mxu0
    %v907 = vadd.f32 0.0, %v906
    %v908 = vpop.f32.mrf.mxu0
    %v909 = vpop.f32.mrf.mxu0
    %v910 = vadd.f32 0.0, %v909
    %v911 = vpop.f32.mrf.mxu0
    %912 = vmatprep.mubr.bf16.mxu0 0
    %913 = vmatmul.mubr.bf16.gmra.mxu0 %v854
    %v914 = vpop.f32.mrf.mxu0
    %v915 = vadd.f32 0.0, %v914
    %v916 = vpop.f32.mrf.mxu0
    %v917 = vpop.f32.mrf.mxu0
    %v918 = vadd.f32 0.0, %v917
    %v919 = vpop.f32.mrf.mxu0
    %920 = vdwg.mxu0
    %v921 = vld [vmem:[%s7] sm:$0xff]
    %v922 = vld [vmem:[%s7 + $0x8] sm:$0xff]
    %v923 = vld [vmem:[%s7 + $0x10] sm:$0xff]
    %v924 = vld [vmem:[%s7 + $0x18] sm:$0xff]
    %v925 = vld [vmem:[%s7 + $0x20] sm:$0xff]
    %v926 = vld [vmem:[%s7 + $0x28] sm:$0xff]
    %v927 = vld [vmem:[%s7 + $0x30] sm:$0xff]
    %v928 = vld [vmem:[%s7 + $0x38] sm:$0xff]
    %v929 = vmul.f32 %v891, %v921
    %v930 = vmul.f32 %v894, %v922
    %v931 = vmul.f32 %v899, %v923
    %v932 = vmul.f32 %v902, %v924
    %v933 = vmul.f32 %v907, %v925
    %v934 = vmul.f32 %v910, %v926
    %v935 = vmul.f32 %v915, %v927
    %v936 = vmul.f32 %v918, %v928
    %s937 = scalar_lea.vmem %s10, 64
    %938 = vst.msk [vmem:[%s937] sm:$0xff] %vm92, %v929
    %939 = vst.msk [vmem:[%s937 + $0x8] sm:$0xff] %vm92, %v930
    %940 = vst.msk [vmem:[%s937 + $0x10] sm:$0xff] %vm92, %v931
    %941 = vst.msk [vmem:[%s937 + $0x18] sm:$0xff] %vm92, %v932
    %942 = vst.msk [vmem:[%s937 + $0x20] sm:$0xff] %vm92, %v933
    %943 = vst.msk [vmem:[%s937 + $0x28] sm:$0xff] %vm92, %v934
    %944 = vst.msk [vmem:[%s937 + $0x30] sm:$0xff] %vm92, %v935
    %945 = vst.msk [vmem:[%s937 + $0x38] sm:$0xff] %vm92, %v936
    %v946 = vpack.c.bf16 %v930, %v929
    %v947 = vpack.c.bf16 %v932, %v931
    %v948 = vpack.c.bf16 %v934, %v933
    %v949 = vpack.c.bf16 %v936, %v935
    %v951 = vsel %vm219, %v645, 0
    %953 = vmatprep.subr.bf16.mxu0 0
    %954 = vmatpush1.bf16.msra.mxu0 0
    %955 = vmatprep.subr.bf16.mxu0 0
    %956 = vmatpush1.bf16.msra.mxu0 0
    %957 = vmatprep.subr.bf16.mxu0 0
    %958 = vmatpush1.bf16.msra.mxu0 0
    %959 = vmatprep.subr.bf16.mxu0 0
    %960 = vmatpush1.bf16.msra.mxu0 0
    %961 = vmatprep.subr.bf16.mxu0 0
    %962 = vmatpush1.bf16.msra.mxu0 %v949
    %963 = vmatprep.subr.bf16.mxu0 0
    %964 = vmatpush1.bf16.msra.mxu0 %v948
    %965 = vmatprep.subr.bf16.mxu0 0
    %966 = vmatpush1.bf16.msra.mxu0 %v947
    %967 = vmatprep.subr.bf16.mxu0 0
    %968 = vmatpush1.bf16.msra.mxu0 %v946
    %969 = vmatprep.subr.bf16.mxu0 0
    %970 = vmatpush2.bf16.msra.mxu0 0
    %971 = vmatprep.subr.bf16.mxu0 0
    %972 = vmatpush2.bf16.msra.mxu0 0
    %973 = vmatprep.subr.bf16.mxu0 0
    %974 = vmatpush2.bf16.msra.mxu0 0
    %975 = vmatprep.subr.bf16.mxu0 0
    %976 = vmatpush2.bf16.msra.mxu0 0
    %977 = vmatprep.subr.bf16.mxu0 0
    %978 = vmatpush2.bf16.msra.mxu0 0
    %979 = vmatprep.subr.bf16.mxu0 0
    %980 = vmatpush2.bf16.msra.mxu0 0
    %981 = vmatprep.subr.bf16.mxu0 0
    %982 = vmatpush2.bf16.msra.mxu0 0
    %983 = vmatprep.subr.bf16.mxu0 0
    %984 = vmatpush2.bf16.msra.mxu0 0
    %985 = vmatprep.mubr.bf16.mxu0 0
    %986 = vmatmul.mubr.bf16.gmra.mxu0 %v951
    %v987 = vpop.f32.mrf.mxu0
    %v988 = vadd.f32 0.0, %v987
    %v989 = vpop.f32.mrf.mxu0
    %v990 = vpop.f32.mrf.mxu0
    %v991 = vadd.f32 0.0, %v990
    %v992 = vpop.f32.mrf.mxu0
    %993 = vdwg.mxu0
    %998 = vrot.lane.b32.xlu0 %v178, 32
    %v999 = vpop.permute.xlu0 %998
    %1000 = vrot.lane.b32.xlu0 %v180, 32
    %v1001 = vpop.permute.xlu0 %1000
    %1002 = vrot.lane.b32.xlu0 %v182, 32
    %v1003 = vpop.permute.xlu0 %1002
    %1004 = vrot.lane.b32.xlu0 %v184, 32
    %v1005 = vpop.permute.xlu0 %1004
    %v1010 = vmul.f32 %v814, %v999
    %v1011 = vmul.f32 %v817, %v1001
    %v1012 = vmul.f32 %v988, %v1003
    %v1013 = vmul.f32 %v991, %v1005
    %v1014 = vpack.c.bf16 %v1011, %v1010
    %v1015 = vpack.c.bf16 %v1013, %v1012
    %v1016 = vld [vmem:[#allocation5] sm:$0xf]
    %v1017 = vld [vmem:[#allocation5 + $0x4] sm:$0xf]
    %v1018 = vld [vmem:[#allocation5 + $0x8] sm:$0xf]
    %v1019 = vld [vmem:[#allocation5 + $0xc] sm:$0xf]
    %v1024 = vunpack.c.l.b16 %v1016
    %v1025 = vunpack.c.l.b16 %v1017
    %v1026 = vunpack.c.l.b16 %v1018
    %v1027 = vunpack.c.l.b16 %v1019
    %v1028 = vpack.c.b16 %v1025, %v1024
    %v1029 = vpack.c.b16 %v1027, %v1026
    %v1033 = vsel %vm92, %v1014, 0
    %v1036 = vsel %vm92, %v1015, 0
    %1038 = vmatprep.subr.bf16.mxu0 0
    %1039 = vmatpush1.bf16.msra.mxu0 0
    %1040 = vmatprep.subr.bf16.mxu0 0
    %1041 = vmatpush1.bf16.msra.mxu0 0
    %1042 = vmatprep.subr.bf16.mxu0 0
    %1043 = vmatpush1.bf16.msra.mxu0 0
    %1044 = vmatprep.subr.bf16.mxu0 0
    %1045 = vmatpush1.bf16.msra.mxu0 0
    %1046 = vmatprep.subr.bf16.mxu0 0
    %1047 = vmatpush1.bf16.msra.mxu0 0
    %1048 = vmatprep.subr.bf16.mxu0 0
    %1049 = vmatpush1.bf16.msra.mxu0 0
    %1050 = vmatprep.subr.bf16.mxu0 0
    %1051 = vmatpush1.bf16.msra.mxu0 %v1029
    %1052 = vmatprep.subr.bf16.mxu0 0
    %1053 = vmatpush1.bf16.msra.mxu0 %v1028
    %1054 = vmatprep.subr.bf16.mxu0 0
    %1055 = vmatpush2.bf16.msra.mxu0 0
    %1056 = vmatprep.subr.bf16.mxu0 0
    %1057 = vmatpush2.bf16.msra.mxu0 0
    %1058 = vmatprep.subr.bf16.mxu0 0
    %1059 = vmatpush2.bf16.msra.mxu0 0
    %1060 = vmatprep.subr.bf16.mxu0 0
    %1061 = vmatpush2.bf16.msra.mxu0 0
    %1062 = vmatprep.subr.bf16.mxu0 0
    %1063 = vmatpush2.bf16.msra.mxu0 0
    %1064 = vmatprep.subr.bf16.mxu0 0
    %1065 = vmatpush2.bf16.msra.mxu0 0
    %1066 = vmatprep.subr.bf16.mxu0 0
    %1067 = vmatpush2.bf16.msra.mxu0 0
    %1068 = vmatprep.subr.bf16.mxu0 0
    %1069 = vmatpush2.bf16.msra.mxu0 0
    %1070 = vmatprep.mubr.bf16.mxu0 0
    %1071 = vmatmul.mubr.bf16.gmra.mxu0 %v1033
    %v1072 = vpop.f32.mrf.mxu0
    %v1073 = vadd.f32 0.0, %v1072
    %v1074 = vpop.f32.mrf.mxu0
    %v1075 = vpop.f32.mrf.mxu0
    %v1076 = vadd.f32 0.0, %v1075
    %v1077 = vpop.f32.mrf.mxu0
    %1078 = vmatprep.mubr.bf16.mxu0 0
    %1079 = vmatmul.mubr.bf16.gmra.mxu0 %v1036
    %v1080 = vpop.f32.mrf.mxu0
    %v1081 = vadd.f32 0.0, %v1080
    %v1082 = vpop.f32.mrf.mxu0
    %v1083 = vpop.f32.mrf.mxu0
    %v1084 = vadd.f32 0.0, %v1083
    %v1085 = vpop.f32.mrf.mxu0
    %1086 = vdwg.mxu0
    %1087 = vst.msk [vmem:[#allocation7] sm:$0xff] %vm92, %v1073
    %1088 = vst.msk [vmem:[#allocation7 + $0x8] sm:$0xff] %vm92, %v1076
    %1089 = vst.msk [vmem:[#allocation7 + $0x10] sm:$0xff] %vm92, %v1081
    %1090 = vst.msk [vmem:[#allocation7 + $0x18] sm:$0xff] %vm92, %v1084
    // Predicated region
    $region46: #{agent_attention.1} parent=1 // pred_check
      _
    $region47: #{agent_attention.1} parent=1 // pred_check_branch
      %1092 = sbr.rel (0) target = $region49
    $region48: #{agent_attention.1} parent=1 // pred_region
      %s1094 = ssub.s32 512, 512
      %1095 = vsyncadd [#allocation4], %s1094
      %s1096 = sshll.u32 [#allocation7], 4
      %s1097 = int_to_ptr.vmem [resolvable:$true] %s1096
      %1102 = dma.vmem_to_hbm [thread:$0]  %s1097, 512, %s9, [#allocation4], 128, 128, 8
    $region49: #{agent_attention.1} parent=1 // pred_fallthru
      _
    // Predicated region
    $region50: #{agent_attention.1} parent=1 // pred_check
      _
    $region51: #{agent_attention.1} parent=1 // pred_check_branch
      %1104 = sbr.rel (0) target = $region53
    $region52: #{agent_attention.1} parent=1 // pred_region
      _
    $region53: #{agent_attention.1} parent=1 // pred_fallthru
      _
    // Predicated region
    $region54: #{agent_attention.1} parent=1 // pred_check
      _
    $region55: #{agent_attention.1} parent=1 // pred_check_branch
      %1106 = sbr.rel (0) target = $region57
    $region56: #{agent_attention.1} parent=1 // pred_region
      %1107 = dma.done [#allocation4], 512
    $region57: #{agent_attention.1} parent=1 // pred_fallthru
      _
    // Predicated region
    $region58: #{agent_attention.1} parent=1 // pred_check
      _
    $region59: #{agent_attention.1} parent=1 // pred_check_branch
      %1109 = sbr.rel (0) target = $region61
    $region60: #{agent_attention.1} parent=1 // pred_region
      _
    $region61: #{agent_attention.1} parent=1 // pred_fallthru
      _
    %1110 = vsyncpa [#allocation3], 1
    %1111 = vsyncpa [#allocation6], 1
    %1112 = vsyncpa [#allocation4], 1

</llo_original>
